<compile_context>
chip_gen: v6e
topology: v6e:2x2x1
jax: 0.10.0
libtpu: 0.0.40
codegen_flags: <defaults>
</compile_context>

<pallas_src>
import functools

import numpy as np
import jax
import jax.numpy as jnp
from jax.experimental import pallas as pl
from jax.experimental.pallas import tpu as pltpu

_MSSSIM_WEIGHTS = (0.0448, 0.2856, 0.3001, 0.2363, 0.1333)
_K1, _K2 = 0.01, 0.03
_DATA_RANGE = 1.0
_C1 = (_K1 * _DATA_RANGE) ** 2
_C2 = (_K2 * _DATA_RANGE) ** 2
_POOL = 16          # 4 MS-SSIM levels of 2x2 avg-pool == one 16x16 avg-pool


def _fusion_loss_kernel(ph_ref, pw_ref, x_ref, y_ref, m_ref,
                        l1_ref, ssim_ref, *, bt):
    x = x_ref[...].astype(jnp.float32)          # (Bt, H, W)
    y = y_ref[...].astype(jnp.float32)
    m = m_ref[...].astype(jnp.float32)

    # ---- WeightL1Loss partial: per-image sum of 0.9*|d|*m + 0.1*(1-m)*|d|
    #      (== |d| * (0.8*m + 0.1)); normalization happens in the wrapper. ----
    wl1 = jnp.abs(x - y) * (0.8 * m + 0.1)
    l1_ref[...] = jnp.sum(jnp.sum(wl1, axis=2, keepdims=True),
                          axis=1, keepdims=True)              # (Bt, 1, 1)

    # ---- MS-SSIM (win_size=1): only the coarsest-level luminance term. ----
    ph = ph_ref[...]                    # (H//16, H), entries 1/16 (constant)
    pw = pw_ref[...]                    # (W, W//16), entries 1/16 (constant)
    inv_cnt = 1.0 / float(ph.shape[0] * pw.shape[1])
    vals = []
    for b in range(bt):                 # Bt small & static -> unrolled
        px = jnp.dot(jnp.dot(ph, x[b], preferred_element_type=jnp.float32),
                     pw, preferred_element_type=jnp.float32)
        py = jnp.dot(jnp.dot(ph, y[b], preferred_element_type=jnp.float32),
                     pw, preferred_element_type=jnp.float32)
        lum = (2.0 * px * py + _C1) / (px * px + py * py + _C1)
        s = jnp.sum(jnp.sum(lum, axis=1, keepdims=True), axis=0, keepdims=True)
        vals.append((s * inv_cnt).reshape(1, 1, 1))
    ssim_ref[...] = jnp.concatenate(vals, axis=0)             # (Bt, 1, 1)


def _pick_block_batch(n, h, w, budget_bytes=24 << 20, max_bt=8):
    """Largest divisor of n (<= max_bt) whose block fits the VMEM budget:
    3 double-buffered inputs + in-kernel temporaries ~= 12x block bytes."""
    per_img = h * w * 4
    cap = max(1, min(max_bt, budget_bytes // (12 * per_img)))
    bt = 1
    for cand in range(1, min(n, cap) + 1):
        if n % cand == 0:
            bt = cand
    return bt


def fusion_loss(x, y, mask):
    n, h, w = x.shape
    # 5 MS-SSIM levels -> 4 exact 2x2 poolings; require divisibility by 16.
    assert h % _POOL == 0 and w % _POOL == 0, "H, W must be divisible by 16"
    # TODO(synk): odd-sized levels would need avg_pool2d zero-padding (padding = s % 2).
    # TODO(synk): for production W < 128, pack images along the last axis so stores are lane-dense.
    # TODO(synk): single images larger than the VMEM budget would need a second grid axis tiling H.
    bt = _pick_block_batch(n, h, w)

    # Host-built constant 16x16 average-pool matrices (hoisted out of the
    # kernel: no per-step iota/compare/cast, 2 matmuls/image instead of 8).
    ph = jnp.asarray(np.kron(np.eye(h // _POOL, dtype=np.float32),
                             np.full((1, _POOL), 1.0 / _POOL, np.float32)))
    pw = jnp.asarray(np.kron(np.eye(w // _POOL, dtype=np.float32),
                             np.full((_POOL, 1), 1.0 / _POOL, np.float32)))

    kernel = functools.partial(_fusion_loss_kernel, bt=bt)
    l1_sums, ssim = pl.pallas_call(
        kernel,
        out_shape=(jax.ShapeDtypeStruct((n, 1, 1), jnp.float32),
                   jax.ShapeDtypeStruct((n, 1, 1), jnp.float32)),
        grid=(n // bt,),
        in_specs=[
            pl.BlockSpec((h // _POOL, h), lambda i: (0, 0)),
            pl.BlockSpec((w, w // _POOL), lambda i: (0, 0)),
            pl.BlockSpec((bt, h, w), lambda i: (i, 0, 0)),
            pl.BlockSpec((bt, h, w), lambda i: (i, 0, 0)),
            pl.BlockSpec((bt, h, w), lambda i: (i, 0, 0)),
        ],
        out_specs=(pl.BlockSpec((bt, 1, 1), lambda i: (i, 0, 0)),
                   pl.BlockSpec((bt, 1, 1), lambda i: (i, 0, 0))),
        compiler_params=pltpu.CompilerParams(
            dimension_semantics=("parallel",),
            vmem_limit_bytes=32 * 1024 * 1024),
    )(ph, pw, x, y, mask)

    # Trivial final combine on N-sized partials (kept out of the kernel: the
    # pow would hit the EUP per image, and this removes the serial accumulator).
    wl1 = jnp.sum(l1_sums) / float(n * h * w)
    msv = jnp.maximum(ssim, 0.0) ** _MSSSIM_WEIGHTS[-1]   # levels 0-3 are 1**w
    ms = jnp.mean(msv)
    return 0.8 * (1.0 - ms) + 0.2 * wl1


def fusion_loss_reference(x, y, mask):
    """Pure-JAX reference matching pytorch_msssim.MS_SSIM(win_size=1) + WeightL1Loss."""
    l1 = jnp.abs(x - y)
    wl1 = jnp.mean(0.9 * l1 * mask + 0.1 * (1.0 - mask) * l1)
    big_x = x[:, None, :, :]
    big_y = y[:, None, :, :]
    msv = jnp.ones((x.shape[0], 1), jnp.float32)
    levels = len(_MSSSIM_WEIGHTS)
    for i in range(levels):
        mu1, mu2 = big_x, big_y
        s1 = big_x * big_x - mu1 * mu1
        s2 = big_y * big_y - mu2 * mu2
        s12 = big_x * big_y - mu1 * mu2
        cs_map = (2.0 * s12 + _C2) / (s1 + s2 + _C2)
        if i < levels - 1:
            cs = cs_map.mean(axis=(2, 3))
            msv = msv * jnp.maximum(cs, 0.0) ** _MSSSIM_WEIGHTS[i]
            nb, c, hh, ww = big_x.shape
            big_x = big_x.reshape(nb, c, hh // 2, 2, ww // 2, 2).mean(axis=(3, 5))
            big_y = big_y.reshape(nb, c, hh // 2, 2, ww // 2, 2).mean(axis=(3, 5))
        else:
            ssim_map = ((2.0 * mu1 * mu2 + _C1)
                        / (mu1 * mu1 + mu2 * mu2 + _C1)) * cs_map
            ssim = ssim_map.mean(axis=(2, 3))
            msv = msv * jnp.maximum(ssim, 0.0) ** _MSSSIM_WEIGHTS[i]
    ms = msv.mean()
    return 0.8 * (1.0 - ms) + 0.2 * wl1


if __name__ == "__main__":
    key = jax.random.PRNGKey(0)

    # Small primary shape consistent with the module (N, H, W), data_range = 1.
    k1, k2, k3, k4, k5, k6 = jax.random.split(key, 6)
    N, H, W = 2, 16, 16
    x = jax.random.uniform(k1, (N, H, W), jnp.float32)
    y = jax.random.uniform(k2, (N, H, W), jnp.float32)
    mask = jax.random.bernoulli(k3, 0.5, (N, H, W)).astype(jnp.float32)

    loss = fusion_loss(x, y, mask)
    jax.block_until_ready(loss)
    ref = fusion_loss_reference(x, y, mask)
    np.testing.assert_allclose(float(loss), float(ref), rtol=1e-5, atol=1e-5)

    # Second shape exercising Bt>1 batching and a >1x1 pooled map.
    N2, H2, W2 = 3, 32, 64
    x2 = jax.random.uniform(k4, (N2, H2, W2), jnp.float32)
    y2 = jax.random.uniform(k5, (N2, H2, W2), jnp.float32)
    mask2 = jax.random.bernoulli(k6, 0.5, (N2, H2, W2)).astype(jnp.float32)

    loss2 = fusion_loss(x2, y2, mask2)
    jax.block_until_ready(loss2)
    ref2 = fusion_loss_reference(x2, y2, mask2)
    np.testing.assert_allclose(float(loss2), float(ref2), rtol=1e-5, atol=1e-5)

    print("KERNEL_OK")
</pallas_src>

<mosaic_0001>
module attributes {stable_mosaic.version = 11 : i64} {
  func.func @_fusion_loss_kernel(%arg0: i32, %arg1: memref<1x16xf32, #tpu.memory_space<vmem>>, %arg2: memref<16x1xf32, #tpu.memory_space<vmem>>, %arg3: memref<2x16x16xf32, #tpu.memory_space<vmem>>, %arg4: memref<2x16x16xf32, #tpu.memory_space<vmem>>, %arg5: memref<2x16x16xf32, #tpu.memory_space<vmem>>, %arg6: memref<2x1x1xf32, #tpu.memory_space<vmem>>, %arg7: memref<2x1x1xf32, #tpu.memory_space<vmem>>) attributes {dimension_semantics = [#tpu.dimension_semantics<parallel>], iteration_bounds = array<i64: 1>, scalar_prefetch = 0 : i64, scratch_operands = 0 : i64, tpu.core_type = #tpu.core_type<tc>, window_params = [{pipeline_mode = #tpu.pipeline_mode<synchronous>, transform_indices = @transform_0, window_bounds = array<i64: 1, 16>}, {pipeline_mode = #tpu.pipeline_mode<synchronous>, transform_indices = @transform_1, window_bounds = array<i64: 16, 1>}, {transform_indices = @transform_2, window_bounds = array<i64: 2, 16, 16>}, {transform_indices = @transform_3, window_bounds = array<i64: 2, 16, 16>}, {transform_indices = @transform_4, window_bounds = array<i64: 2, 16, 16>}, {transform_indices = @transform_5, window_bounds = array<i64: 2, 1, 1>}, {transform_indices = @transform_6, window_bounds = array<i64: 2, 1, 1>}]} {
    %c0 = arith.constant 0 : index
    %c0_0 = arith.constant 0 : index
    %c0_1 = arith.constant 0 : index
    %0 = vector.load %arg3[%c0, %c0_0, %c0_1] : memref<2x16x16xf32, #tpu.memory_space<vmem>>, vector<2x16x16xf32>
    %c0_2 = arith.constant 0 : index
    %c0_3 = arith.constant 0 : index
    %c0_4 = arith.constant 0 : index
    %1 = vector.load %arg4[%c0_2, %c0_3, %c0_4] : memref<2x16x16xf32, #tpu.memory_space<vmem>>, vector<2x16x16xf32>
    %c0_5 = arith.constant 0 : index
    %c0_6 = arith.constant 0 : index
    %c0_7 = arith.constant 0 : index
    %2 = vector.load %arg5[%c0_5, %c0_6, %c0_7] : memref<2x16x16xf32, #tpu.memory_space<vmem>>, vector<2x16x16xf32>
    %3 = arith.subf %0, %1 : vector<2x16x16xf32>
    %4 = math.absf %3 : vector<2x16x16xf32>
    %cst = arith.constant 8.000000e-01 : f32
    %5 = vector.broadcast %cst : f32 to vector<2x16x16xf32>
    %6 = arith.mulf %5, %2 : vector<2x16x16xf32>
    %cst_8 = arith.constant 1.000000e-01 : f32
    %7 = vector.broadcast %cst_8 : f32 to vector<2x16x16xf32>
    %8 = arith.addf %6, %7 : vector<2x16x16xf32>
    %9 = arith.mulf %4, %8 : vector<2x16x16xf32>
    %cst_9 = arith.constant dense<0.000000e+00> : vector<2x16xf32>
    %10 = vector.multi_reduction <add>, %9, %cst_9 [2] : vector<2x16x16xf32> to vector<2x16xf32>
    %11 = vector.shape_cast %10 : vector<2x16xf32> to vector<2x16x1xf32>
    %cst_10 = arith.constant dense<0.000000e+00> : vector<2x1xf32>
    %12 = vector.multi_reduction <add>, %11, %cst_10 [1] : vector<2x16x1xf32> to vector<2x1xf32>
    %13 = vector.shape_cast %12 : vector<2x1xf32> to vector<2x1x1xf32>
    %c0_11 = arith.constant 0 : index
    %c0_12 = arith.constant 0 : index
    %c0_13 = arith.constant 0 : index
    %14 = vector.load %arg6[%c0_11, %c0_12, %c0_13] : memref<2x1x1xf32, #tpu.memory_space<vmem>>, vector<2x1x1xf32>
    tpu.vector_store %arg6[%c0_11, %c0_12, %c0_13], %13 {strides = array<i32>} : memref<2x1x1xf32, #tpu.memory_space<vmem>>, vector<2x1x1xf32>,
    %c0_14 = arith.constant 0 : index
    %c0_15 = arith.constant 0 : index
    %15 = vector.load %arg1[%c0_14, %c0_15] : memref<1x16xf32, #tpu.memory_space<vmem>>, vector<1x16xf32>
    %c0_16 = arith.constant 0 : index
    %c0_17 = arith.constant 0 : index
    %16 = vector.load %arg2[%c0_16, %c0_17] : memref<16x1xf32, #tpu.memory_space<vmem>>, vector<16x1xf32>
    %17 = vector.extract_strided_slice %0 {offsets = [0, 0, 0], sizes = [1, 16, 16], strides = [1, 1, 1]} : vector<2x16x16xf32> to vector<1x16x16xf32>
    %18 = vector.shape_cast %17 : vector<1x16x16xf32> to vector<16x16xf32>
    %cst_18 = arith.constant dense<0.000000e+00> : vector<1x16xf32>
    %19 = tpu.matmul %15, %18, %cst_18 {dimension_numbers = #tpu.dot_dimension_numbers<[1], [0], [0], [1], [0, 0, 1, 1], [], []>} : vector<1x16xf32>, vector<16x16xf32>, vector<1x16xf32> -> vector<1x16xf32>
    %cst_19 = arith.constant dense<0.000000e+00> : vector<1x1xf32>
    %20 = tpu.matmul %19, %16, %cst_19 {dimension_numbers = #tpu.dot_dimension_numbers<[1], [0], [0], [1], [0, 0, 1, 1], [], []>} : vector<1x16xf32>, vector<16x1xf32>, vector<1x1xf32> -> vector<1x1xf32>
    %21 = vector.extract_strided_slice %1 {offsets = [0, 0, 0], sizes = [1, 16, 16], strides = [1, 1, 1]} : vector<2x16x16xf32> to vector<1x16x16xf32>
    %22 = vector.shape_cast %21 : vector<1x16x16xf32> to vector<16x16xf32>
    %cst_20 = arith.constant dense<0.000000e+00> : vector<1x16xf32>
    %23 = tpu.matmul %15, %22, %cst_20 {dimension_numbers = #tpu.dot_dimension_numbers<[1], [0], [0], [1], [0, 0, 1, 1], [], []>} : vector<1x16xf32>, vector<16x16xf32>, vector<1x16xf32> -> vector<1x16xf32>
    %cst_21 = arith.constant dense<0.000000e+00> : vector<1x1xf32>
    %24 = tpu.matmul %23, %16, %cst_21 {dimension_numbers = #tpu.dot_dimension_numbers<[1], [0], [0], [1], [0, 0, 1, 1], [], []>} : vector<1x16xf32>, vector<16x1xf32>, vector<1x1xf32> -> vector<1x1xf32>
    %cst_22 = arith.constant 2.000000e+00 : f32
    %25 = vector.broadcast %cst_22 : f32 to vector<1x1xf32>
    %26 = arith.mulf %25, %20 : vector<1x1xf32>
    %27 = arith.mulf %26, %24 : vector<1x1xf32>
    %cst_23 = arith.constant 9.99999974E-5 : f32
    %28 = vector.broadcast %cst_23 : f32 to vector<1x1xf32>
    %29 = arith.addf %27, %28 : vector<1x1xf32>
    %30 = arith.mulf %20, %20 : vector<1x1xf32>
    %31 = arith.mulf %24, %24 : vector<1x1xf32>
    %32 = arith.addf %30, %31 : vector<1x1xf32>
    %cst_24 = arith.constant 9.99999974E-5 : f32
    %33 = vector.broadcast %cst_24 : f32 to vector<1x1xf32>
    %34 = arith.addf %32, %33 : vector<1x1xf32>
    %35 = arith.divf %29, %34 : vector<1x1xf32>
    %cst_25 = arith.constant dense<0.000000e+00> : vector<1xf32>
    %36 = vector.multi_reduction <add>, %35, %cst_25 [1] : vector<1x1xf32> to vector<1xf32>
    %37 = vector.shape_cast %36 : vector<1xf32> to vector<1x1xf32>
    %cst_26 = arith.constant dense<0.000000e+00> : vector<1xf32>
    %38 = vector.multi_reduction <add>, %37, %cst_26 [0] : vector<1x1xf32> to vector<1xf32>
    %39 = vector.shape_cast %38 : vector<1xf32> to vector<1x1xf32>
    %cst_27 = arith.constant 1.000000e+00 : f32
    %40 = vector.broadcast %cst_27 : f32 to vector<1x1xf32>
    %41 = arith.mulf %39, %40 : vector<1x1xf32>
    %42 = vector.shape_cast %41 : vector<1x1xf32> to vector<1x1x1xf32>
    %43 = vector.extract_strided_slice %0 {offsets = [1, 0, 0], sizes = [1, 16, 16], strides = [1, 1, 1]} : vector<2x16x16xf32> to vector<1x16x16xf32>
    %44 = vector.shape_cast %43 : vector<1x16x16xf32> to vector<16x16xf32>
    %cst_28 = arith.constant dense<0.000000e+00> : vector<1x16xf32>
    %45 = tpu.matmul %15, %44, %cst_28 {dimension_numbers = #tpu.dot_dimension_numbers<[1], [0], [0], [1], [0, 0, 1, 1], [], []>} : vector<1x16xf32>, vector<16x16xf32>, vector<1x16xf32> -> vector<1x16xf32>
    %cst_29 = arith.constant dense<0.000000e+00> : vector<1x1xf32>
    %46 = tpu.matmul %45, %16, %cst_29 {dimension_numbers = #tpu.dot_dimension_numbers<[1], [0], [0], [1], [0, 0, 1, 1], [], []>} : vector<1x16xf32>, vector<16x1xf32>, vector<1x1xf32> -> vector<1x1xf32>
    %47 = vector.extract_strided_slice %1 {offsets = [1, 0, 0], sizes = [1, 16, 16], strides = [1, 1, 1]} : vector<2x16x16xf32> to vector<1x16x16xf32>
    %48 = vector.shape_cast %47 : vector<1x16x16xf32> to vector<16x16xf32>
    %cst_30 = arith.constant dense<0.000000e+00> : vector<1x16xf32>
    %49 = tpu.matmul %15, %48, %cst_30 {dimension_numbers = #tpu.dot_dimension_numbers<[1], [0], [0], [1], [0, 0, 1, 1], [], []>} : vector<1x16xf32>, vector<16x16xf32>, vector<1x16xf32> -> vector<1x16xf32>
    %cst_31 = arith.constant dense<0.000000e+00> : vector<1x1xf32>
    %50 = tpu.matmul %49, %16, %cst_31 {dimension_numbers = #tpu.dot_dimension_numbers<[1], [0], [0], [1], [0, 0, 1, 1], [], []>} : vector<1x16xf32>, vector<16x1xf32>, vector<1x1xf32> -> vector<1x1xf32>
    %cst_32 = arith.constant 2.000000e+00 : f32
    %51 = vector.broadcast %cst_32 : f32 to vector<1x1xf32>
    %52 = arith.mulf %51, %46 : vector<1x1xf32>
    %53 = arith.mulf %52, %50 : vector<1x1xf32>
    %cst_33 = arith.constant 9.99999974E-5 : f32
    %54 = vector.broadcast %cst_33 : f32 to vector<1x1xf32>
    %55 = arith.addf %53, %54 : vector<1x1xf32>
    %56 = arith.mulf %46, %46 : vector<1x1xf32>
    %57 = arith.mulf %50, %50 : vector<1x1xf32>
    %58 = arith.addf %56, %57 : vector<1x1xf32>
    %cst_34 = arith.constant 9.99999974E-5 : f32
    %59 = vector.broadcast %cst_34 : f32 to vector<1x1xf32>
    %60 = arith.addf %58, %59 : vector<1x1xf32>
    %61 = arith.divf %55, %60 : vector<1x1xf32>
    %cst_35 = arith.constant dense<0.000000e+00> : vector<1xf32>
    %62 = vector.multi_reduction <add>, %61, %cst_35 [1] : vector<1x1xf32> to vector<1xf32>
    %63 = vector.shape_cast %62 : vector<1xf32> to vector<1x1xf32>
    %cst_36 = arith.constant dense<0.000000e+00> : vector<1xf32>
    %64 = vector.multi_reduction <add>, %63, %cst_36 [0] : vector<1x1xf32> to vector<1xf32>
    %65 = vector.shape_cast %64 : vector<1xf32> to vector<1x1xf32>
    %cst_37 = arith.constant 1.000000e+00 : f32
    %66 = vector.broadcast %cst_37 : f32 to vector<1x1xf32>
    %67 = arith.mulf %65, %66 : vector<1x1xf32>
    %68 = vector.shape_cast %67 : vector<1x1xf32> to vector<1x1x1xf32>
    %69 = tpu.concatenate %42, %68 in 0 : vector<1x1x1xf32>, vector<1x1x1xf32> -> vector<2x1x1xf32>
    %c0_38 = arith.constant 0 : index
    %c0_39 = arith.constant 0 : index
    %c0_40 = arith.constant 0 : index
    %70 = vector.load %arg7[%c0_38, %c0_39, %c0_40] : memref<2x1x1xf32, #tpu.memory_space<vmem>>, vector<2x1x1xf32>
    tpu.vector_store %arg7[%c0_38, %c0_39, %c0_40], %69 {strides = array<i32>} : memref<2x1x1xf32, #tpu.memory_space<vmem>>, vector<2x1x1xf32>,
    return
  }
  func.func @transform_0(%arg0: i32) -> (i32, i32) {
    %c0_i32 = arith.constant 0 : i32
    %c0_i32_0 = arith.constant 0 : i32
    %c0_i32_1 = arith.constant 0 : i32
    return %c0_i32, %c0_i32_0 : i32, i32
  }
  func.func @transform_1(%arg0: i32) -> (i32, i32) {
    %c0_i32 = arith.constant 0 : i32
    %c0_i32_0 = arith.constant 0 : i32
    %c0_i32_1 = arith.constant 0 : i32
    return %c0_i32, %c0_i32_0 : i32, i32
  }
  func.func @transform_2(%arg0: i32) -> (i32, i32, i32) {
    %c0_i32 = arith.constant 0 : i32
    %c0_i32_0 = arith.constant 0 : i32
    %c0_i32_1 = arith.constant 0 : i32
    return %arg0, %c0_i32, %c0_i32_0 : i32, i32, i32
  }
  func.func @transform_3(%arg0: i32) -> (i32, i32, i32) {
    %c0_i32 = arith.constant 0 : i32
    %c0_i32_0 = arith.constant 0 : i32
    %c0_i32_1 = arith.constant 0 : i32
    return %arg0, %c0_i32, %c0_i32_0 : i32, i32, i32
  }
  func.func @transform_4(%arg0: i32) -> (i32, i32, i32) {
    %c0_i32 = arith.constant 0 : i32
    %c0_i32_0 = arith.constant 0 : i32
    %c0_i32_1 = arith.constant 0 : i32
    return %arg0, %c0_i32, %c0_i32_0 : i32, i32, i32
  }
  func.func @transform_5(%arg0: i32) -> (i32, i32, i32) {
    %c0_i32 = arith.constant 0 : i32
    %c0_i32_0 = arith.constant 0 : i32
    %c0_i32_1 = arith.constant 0 : i32
    return %arg0, %c0_i32, %c0_i32_0 : i32, i32, i32
  }
  func.func @transform_6(%arg0: i32) -> (i32, i32, i32) {
    %c0_i32 = arith.constant 0 : i32
    %c0_i32_0 = arith.constant 0 : i32
    %c0_i32_1 = arith.constant 0 : i32
    return %arg0, %c0_i32, %c0_i32_0 : i32, i32, i32
  }
}

</mosaic_0001>

<llo_original>
// kernel: tpu_custom_call.1
$region0: #{tpu_custom_call.1}
  #allocation0 [shape = 'u32[]', space=smem, size = 0x4, offset = 0x4, fixed_abs, tag = 'smem constant byte address 0x4 - core index']
  #allocation1 [shape = 'u32[144,128]{1,0:T(1,128)}', space=vmem, size = 0x12000, scoped, tag = 'internal scratch']
  %s0 = inlined_call_operand.vmem [shape: f32[1,16], index: 0, kind: input, shape index: {}]
  %s1 = inlined_call_operand.vmem [shape: f32[16,1], index: 1, kind: input, shape index: {}]
  %s2 = inlined_call_operand.hbm [shape: f32[2,16,16], index: 2, kind: input, shape index: {}]
  %s3 = inlined_call_operand.hbm [shape: f32[2,16,16], index: 3, kind: input, shape index: {}]
  %s4 = inlined_call_operand.hbm [shape: f32[2,16,16], index: 4, kind: input, shape index: {}]
  %s5 = inlined_call_operand.vmem [shape: f32[2,1,1], index: 5, kind: output, shape index: {0}]
  %s6 = inlined_call_operand.vmem [shape: f32[2,1,1], index: 6, kind: output, shape index: {1}]
  %7 = xla_tuple %s5, %s6
  %s8 = sld [smem:[#allocation0]]
  $region50: #{tpu_custom_call.1} parent=0
    _
  %s10 = ssub.s32 1, %s8
  %s11 = scalar_select 0, %s10, %s8
  $region1: #{tpu_custom_call.1} parent=0
    #allocation2 [shape = 'u8[16384]{0}', space=vmem, size = 0x4000, scoped, tag = 'input window, operand 2, single buffered']
    #allocation3 [shape = 's32[1]{0}', space=sflag, size = 0x4, scoped, tag = 'scoped memory for tpu_custom_call.1']
    #allocation4 [shape = 'u8[16384]{0}', space=vmem, size = 0x4000, scoped, tag = 'input window, operand 3, single buffered']
    #allocation5 [shape = 's32[1]{0}', space=sflag, size = 0x4, scoped, tag = 'scoped memory for tpu_custom_call.1']
    #allocation6 [shape = 'u8[16384]{0}', space=vmem, size = 0x4000, scoped, tag = 'input window, operand 4, single buffered']
    %12 = vsyncpa [#allocation3], 0
    %13 = vsyncpa [#allocation5], 0
    // Predicated region
    $region2: #{tpu_custom_call.1} parent=1 // pred_check
      _
    $region3: #{tpu_custom_call.1} parent=1 // pred_check_branch
      %15 = sbr.rel (0) target = $region5
    $region4: #{tpu_custom_call.1} parent=1 // pred_region
      _
    $region5: #{tpu_custom_call.1} parent=1 // pred_fallthru
      _
    // Predicated region
    $region6: #{tpu_custom_call.1} parent=1 // pred_check
      _
    $region7: #{tpu_custom_call.1} parent=1 // pred_check_branch
      %17 = sbr.rel (0) target = $region9
    $region8: #{tpu_custom_call.1} parent=1 // pred_region
      _
    $region9: #{tpu_custom_call.1} parent=1 // pred_fallthru
      _
    // Predicated region
    $region10: #{tpu_custom_call.1} parent=1 // pred_check
      _
    $region11: #{tpu_custom_call.1} parent=1 // pred_check_branch
      %19 = sbr.rel (0) target = $region13
    $region12: #{tpu_custom_call.1} parent=1 // pred_region
      %s21 = ssub.s32 512, 512
      %22 = vsyncadd [#allocation3], %s21
      %s23 = sshll.u32 [#allocation2], 4
      %s24 = int_to_ptr.vmem [resolvable:$true] %s23
      %29 = dma.hbm_to_vmem [thread:$0]  %s2, 512, %s24, [#allocation3], 128, 128, 8
    $region13: #{tpu_custom_call.1} parent=1 // pred_fallthru
      _
    // Predicated region
    $region14: #{tpu_custom_call.1} parent=1 // pred_check
      _
    $region15: #{tpu_custom_call.1} parent=1 // pred_check_branch
      %31 = sbr.rel (0) target = $region17
    $region16: #{tpu_custom_call.1} parent=1 // pred_region
      %s33 = ssub.s32 512, 512
      %34 = vsyncadd [#allocation5], %s33
      %s35 = sshll.u32 [#allocation4], 4
      %s36 = int_to_ptr.vmem [resolvable:$true] %s35
      %41 = dma.hbm_to_vmem [thread:$0]  %s3, 512, %s36, [#allocation5], 128, 128, 8
    $region17: #{tpu_custom_call.1} parent=1 // pred_fallthru
      _
    // Predicated region
    $region18: #{tpu_custom_call.1} parent=1 // pred_check
      _
    $region19: #{tpu_custom_call.1} parent=1 // pred_check_branch
      %43 = sbr.rel (0) target = $region21
    $region20: #{tpu_custom_call.1} parent=1 // pred_region
      %s45 = ssub.s32 512, 512
      %46 = vsyncadd [#allocation5], %s45
      %s47 = sshll.u32 [#allocation6], 4
      %s48 = int_to_ptr.vmem [resolvable:$true] %s47
      %53 = dma.hbm_to_vmem [thread:$0]  %s4, 512, %s48, [#allocation5], 128, 128, 8
    $region21: #{tpu_custom_call.1} parent=1 // pred_fallthru
      _
    // Predicated region
    $region22: #{tpu_custom_call.1} parent=1 // pred_check
      _
    $region23: #{tpu_custom_call.1} parent=1 // pred_check_branch
      %55 = sbr.rel (0) target = $region25
    $region24: #{tpu_custom_call.1} parent=1 // pred_region
      %56 = dma.done [#allocation3], 512
    $region25: #{tpu_custom_call.1} parent=1 // pred_fallthru
      _
    // Predicated region
    $region26: #{tpu_custom_call.1} parent=1 // pred_check
      _
    $region27: #{tpu_custom_call.1} parent=1 // pred_check_branch
      %58 = sbr.rel (0) target = $region29
    $region28: #{tpu_custom_call.1} parent=1 // pred_region
      %59 = dma.done [#allocation5], 512
    $region29: #{tpu_custom_call.1} parent=1 // pred_fallthru
      _
    // Predicated region
    $region30: #{tpu_custom_call.1} parent=1 // pred_check
      _
    $region31: #{tpu_custom_call.1} parent=1 // pred_check_branch
      %61 = sbr.rel (0) target = $region33
    $region32: #{tpu_custom_call.1} parent=1 // pred_region
      %62 = dma.done [#allocation5], 512
    $region33: #{tpu_custom_call.1} parent=1 // pred_fallthru
      _
    %v63 = vld [vmem:[#allocation2] sm:$0xff]
    %v64 = vld [vmem:[#allocation2 + $0x8] sm:$0xff]
    %v65 = vld [vmem:[#allocation2 + $0x10] sm:$0xff]
    %v66 = vld [vmem:[#allocation2 + $0x18] sm:$0xff]
    %v67 = vld [vmem:[#allocation4] sm:$0xff]
    %v68 = vld [vmem:[#allocation4 + $0x8] sm:$0xff]
    %v69 = vld [vmem:[#allocation4 + $0x10] sm:$0xff]
    %v70 = vld [vmem:[#allocation4 + $0x18] sm:$0xff]
    %v71 = vld [vmem:[#allocation6] sm:$0xff]
    %v72 = vld [vmem:[#allocation6 + $0x8] sm:$0xff]
    %v73 = vld [vmem:[#allocation6 + $0x10] sm:$0xff]
    %v74 = vld [vmem:[#allocation6 + $0x18] sm:$0xff]
    %v75 = vsub.f32 %v63, %v67
    %v76 = vsub.f32 %v64, %v68
    %v77 = vsub.f32 %v65, %v69
    %v78 = vsub.f32 %v66, %v70
    %v79 = vand.u32 2147483647, %v75
    %v80 = vand.u32 2147483647, %v76
    %v81 = vand.u32 2147483647, %v77
    %v82 = vand.u32 2147483647, %v78
    %v83 = vmul.f32 %v71, 0.8
    %v84 = vmul.f32 %v72, 0.8
    %v85 = vmul.f32 %v73, 0.8
    %v86 = vmul.f32 %v74, 0.8
    %v87 = vadd.f32 %v83, 0.1
    %v88 = vadd.f32 %v84, 0.1
    %v89 = vadd.f32 %v85, 0.1
    %v90 = vadd.f32 %v86, 0.1
    %v91 = vmul.f32 %v79, %v87
    %v92 = vmul.f32 %v80, %v88
    %v93 = vmul.f32 %v81, %v89
    %v94 = vmul.f32 %v82, %v90
    %vm95 = vcmask 130048
    %v96 = vsel %vm95, %v91, 0.0
    %97 = vadd.xlane.f32.xlu0 %v96
    %v98 = vpop.xlane.xlu0 %97
    %v99 = vsel %vm95, %v92, 0.0
    %100 = vadd.xlane.f32.xlu0 %v99
    %v101 = vpop.xlane.xlu0 %100
    %v102 = vsel %vm95, %v93, 0.0
    %103 = vadd.xlane.f32.xlu0 %v102
    %v104 = vpop.xlane.xlu0 %103
    %v105 = vsel %vm95, %v94, 0.0
    %106 = vadd.xlane.f32.xlu0 %v105
    %v107 = vpop.xlane.xlu0 %106
    %v108 = vadd.f32 %v98, %v101
    %v109 = vrot.slane %v108, 4
    %v110 = vadd.f32 %v108, %v109
    %v111 = vrot.slane %v110, 2
    %v112 = vadd.f32 %v110, %v111
    %v113 = vrot.slane %v112, 1
    %v114 = vadd.f32 %v112, %v113
    %v115 = vadd.f32 %v104, %v107
    %v116 = vrot.slane %v115, 4
    %v117 = vadd.f32 %v115, %v116
    %v118 = vrot.slane %v117, 2
    %v119 = vadd.f32 %v117, %v118
    %v120 = vrot.slane %v119, 1
    %v121 = vadd.f32 %v119, %v120
    %vm122 = vcmask 0
    %123 = vst.msk [vmem:[%s5] sm:$0x1] %vm122, %v114
    %124 = vst.msk [vmem:[%s5 + $0x1] sm:$0x1] %vm122, %v121
    %v125 = vld [vmem:[%s0] sm:$0x1]
    %v126 = vld [vmem:[%s1] sm:$0xff]
    %v127 = vld [vmem:[%s1 + $0x8] sm:$0xff]
    %v129 = vsel %vm95, %v125, 0
    %131 = vmatprep.subr.mxu0 0.0
    %132 = vmatpush1.msra.mxu0 0.0
    %133 = vmatprep.subr.mxu0 0.0
    %134 = vmatpush1.msra.mxu0 0.0
    %135 = vmatprep.subr.mxu0 0.0
    %136 = vmatpush1.msra.mxu0 0.0
    %137 = vmatprep.subr.mxu0 0.0
    %138 = vmatpush1.msra.mxu0 0.0
    %139 = vmatprep.subr.mxu0 0.0
    %140 = vmatpush1.msra.mxu0 0.0
    %141 = vmatprep.subr.mxu0 0.0
    %142 = vmatpush1.msra.mxu0 0.0
    %143 = vmatprep.subr.mxu0 0.0
    %144 = vmatpush1.msra.mxu0 0.0
    %145 = vmatprep.subr.mxu0 0.0
    %146 = vmatpush1.msra.mxu0 0.0
    %147 = vmatprep.subr.mxu0 0.0
    %148 = vmatpush1.msra.mxu0 0.0
    %149 = vmatprep.subr.mxu0 0.0
    %150 = vmatpush1.msra.mxu0 0.0
    %151 = vmatprep.subr.mxu0 0.0
    %152 = vmatpush1.msra.mxu0 0.0
    %153 = vmatprep.subr.mxu0 0.0
    %154 = vmatpush1.msra.mxu0 0.0
    %155 = vmatprep.subr.mxu0 0.0
    %156 = vmatpush1.msra.mxu0 0.0
    %157 = vmatprep.subr.mxu0 0.0
    %158 = vmatpush1.msra.mxu0 0.0
    %159 = vmatprep.subr.mxu0 0.0
    %160 = vmatpush1.msra.mxu0 %v64
    %161 = vmatprep.subr.mxu0 0.0
    %162 = vmatpush1.msra.mxu0 %v63
    %163 = vmatprep.subr.mxu0 0.0
    %164 = vmatpush2.msra.mxu0 0.0
    %165 = vmatprep.subr.mxu0 0.0
    %166 = vmatpush2.msra.mxu0 0.0
    %167 = vmatprep.subr.mxu0 0.0
    %168 = vmatpush2.msra.mxu0 0.0
    %169 = vmatprep.subr.mxu0 0.0
    %170 = vmatpush2.msra.mxu0 0.0
    %171 = vmatprep.subr.mxu0 0.0
    %172 = vmatpush2.msra.mxu0 0.0
    %173 = vmatprep.subr.mxu0 0.0
    %174 = vmatpush2.msra.mxu0 0.0
    %175 = vmatprep.subr.mxu0 0.0
    %176 = vmatpush2.msra.mxu0 0.0
    %177 = vmatprep.subr.mxu0 0.0
    %178 = vmatpush2.msra.mxu0 0.0
    %179 = vmatprep.subr.mxu0 0.0
    %180 = vmatpush2.msra.mxu0 0.0
    %181 = vmatprep.subr.mxu0 0.0
    %182 = vmatpush2.msra.mxu0 0.0
    %183 = vmatprep.subr.mxu0 0.0
    %184 = vmatpush2.msra.mxu0 0.0
    %185 = vmatprep.subr.mxu0 0.0
    %186 = vmatpush2.msra.mxu0 0.0
    %187 = vmatprep.subr.mxu0 0.0
    %188 = vmatpush2.msra.mxu0 0.0
    %189 = vmatprep.subr.mxu0 0.0
    %190 = vmatpush2.msra.mxu0 0.0
    %191 = vmatprep.subr.mxu0 0.0
    %192 = vmatpush2.msra.mxu0 0.0
    %193 = vmatprep.subr.mxu0 0.0
    %194 = vmatpush2.msra.mxu0 0.0
    %195 = vmatprep.mubr.f32.mxu0 0.0
    %196 = vmatmul.mubr.f32.gmra.mxu0 %v129
    %v197 = vpop.f32.mrf.mxu0
    %v198 = vadd.f32 0.0, %v197
    %v199 = vpop.f32.mrf.mxu0
    %200 = vdwg.mxu0
    %v202 = vsel %vm95, %v198, 0
    %204 = vmatprep.subr.mxu0 0.0
    %205 = vmatpush1.msra.mxu0 0.0
    %206 = vmatprep.subr.mxu0 0.0
    %207 = vmatpush1.msra.mxu0 0.0
    %208 = vmatprep.subr.mxu0 0.0
    %209 = vmatpush1.msra.mxu0 0.0
    %210 = vmatprep.subr.mxu0 0.0
    %211 = vmatpush1.msra.mxu0 0.0
    %212 = vmatprep.subr.mxu0 0.0
    %213 = vmatpush1.msra.mxu0 0.0
    %214 = vmatprep.subr.mxu0 0.0
    %215 = vmatpush1.msra.mxu0 0.0
    %216 = vmatprep.subr.mxu0 0.0
    %217 = vmatpush1.msra.mxu0 0.0
    %218 = vmatprep.subr.mxu0 0.0
    %219 = vmatpush1.msra.mxu0 0.0
    %220 = vmatprep.subr.mxu0 0.0
    %221 = vmatpush1.msra.mxu0 0.0
    %222 = vmatprep.subr.mxu0 0.0
    %223 = vmatpush1.msra.mxu0 0.0
    %224 = vmatprep.subr.mxu0 0.0
    %225 = vmatpush1.msra.mxu0 0.0
    %226 = vmatprep.subr.mxu0 0.0
    %227 = vmatpush1.msra.mxu0 0.0
    %228 = vmatprep.subr.mxu0 0.0
    %229 = vmatpush1.msra.mxu0 0.0
    %230 = vmatprep.subr.mxu0 0.0
    %231 = vmatpush1.msra.mxu0 0.0
    %232 = vmatprep.subr.mxu0 0.0
    %233 = vmatpush1.msra.mxu0 %v127
    %234 = vmatprep.subr.mxu0 0.0
    %235 = vmatpush1.msra.mxu0 %v126
    %236 = vmatprep.subr.mxu0 0.0
    %237 = vmatpush2.msra.mxu0 0.0
    %238 = vmatprep.subr.mxu0 0.0
    %239 = vmatpush2.msra.mxu0 0.0
    %240 = vmatprep.subr.mxu0 0.0
    %241 = vmatpush2.msra.mxu0 0.0
    %242 = vmatprep.subr.mxu0 0.0
    %243 = vmatpush2.msra.mxu0 0.0
    %244 = vmatprep.subr.mxu0 0.0
    %245 = vmatpush2.msra.mxu0 0.0
    %246 = vmatprep.subr.mxu0 0.0
    %247 = vmatpush2.msra.mxu0 0.0
    %248 = vmatprep.subr.mxu0 0.0
    %249 = vmatpush2.msra.mxu0 0.0
    %250 = vmatprep.subr.mxu0 0.0
    %251 = vmatpush2.msra.mxu0 0.0
    %252 = vmatprep.subr.mxu0 0.0
    %253 = vmatpush2.msra.mxu0 0.0
    %254 = vmatprep.subr.mxu0 0.0
    %255 = vmatpush2.msra.mxu0 0.0
    %256 = vmatprep.subr.mxu0 0.0
    %257 = vmatpush2.msra.mxu0 0.0
    %258 = vmatprep.subr.mxu0 0.0
    %259 = vmatpush2.msra.mxu0 0.0
    %260 = vmatprep.subr.mxu0 0.0
    %261 = vmatpush2.msra.mxu0 0.0
    %262 = vmatprep.subr.mxu0 0.0
    %263 = vmatpush2.msra.mxu0 0.0
    %264 = vmatprep.subr.mxu0 0.0
    %265 = vmatpush2.msra.mxu0 0.0
    %266 = vmatprep.subr.mxu0 0.0
    %267 = vmatpush2.msra.mxu0 0.0
    %268 = vmatprep.mubr.f32.mxu0 0.0
    %269 = vmatmul.mubr.f32.gmra.mxu0 %v202
    %v270 = vpop.f32.mrf.mxu0
    %v271 = vadd.f32 0.0, %v270
    %v272 = vpop.f32.mrf.mxu0
    %273 = vdwg.mxu0
    %274 = vmatprep.subr.mxu0 0.0
    %275 = vmatpush1.msra.mxu0 0.0
    %276 = vmatprep.subr.mxu0 0.0
    %277 = vmatpush1.msra.mxu0 0.0
    %278 = vmatprep.subr.mxu0 0.0
    %279 = vmatpush1.msra.mxu0 0.0
    %280 = vmatprep.subr.mxu0 0.0
    %281 = vmatpush1.msra.mxu0 0.0
    %282 = vmatprep.subr.mxu0 0.0
    %283 = vmatpush1.msra.mxu0 0.0
    %284 = vmatprep.subr.mxu0 0.0
    %285 = vmatpush1.msra.mxu0 0.0
    %286 = vmatprep.subr.mxu0 0.0
    %287 = vmatpush1.msra.mxu0 0.0
    %288 = vmatprep.subr.mxu0 0.0
    %289 = vmatpush1.msra.mxu0 0.0
    %290 = vmatprep.subr.mxu0 0.0
    %291 = vmatpush1.msra.mxu0 0.0
    %292 = vmatprep.subr.mxu0 0.0
    %293 = vmatpush1.msra.mxu0 0.0
    %294 = vmatprep.subr.mxu0 0.0
    %295 = vmatpush1.msra.mxu0 0.0
    %296 = vmatprep.subr.mxu0 0.0
    %297 = vmatpush1.msra.mxu0 0.0
    %298 = vmatprep.subr.mxu0 0.0
    %299 = vmatpush1.msra.mxu0 0.0
    %300 = vmatprep.subr.mxu0 0.0
    %301 = vmatpush1.msra.mxu0 0.0
    %302 = vmatprep.subr.mxu0 0.0
    %303 = vmatpush1.msra.mxu0 %v68
    %304 = vmatprep.subr.mxu0 0.0
    %305 = vmatpush1.msra.mxu0 %v67
    %306 = vmatprep.subr.mxu0 0.0
    %307 = vmatpush2.msra.mxu0 0.0
    %308 = vmatprep.subr.mxu0 0.0
    %309 = vmatpush2.msra.mxu0 0.0
    %310 = vmatprep.subr.mxu0 0.0
    %311 = vmatpush2.msra.mxu0 0.0
    %312 = vmatprep.subr.mxu0 0.0
    %313 = vmatpush2.msra.mxu0 0.0
    %314 = vmatprep.subr.mxu0 0.0
    %315 = vmatpush2.msra.mxu0 0.0
    %316 = vmatprep.subr.mxu0 0.0
    %317 = vmatpush2.msra.mxu0 0.0
    %318 = vmatprep.subr.mxu0 0.0
    %319 = vmatpush2.msra.mxu0 0.0
    %320 = vmatprep.subr.mxu0 0.0
    %321 = vmatpush2.msra.mxu0 0.0
    %322 = vmatprep.subr.mxu0 0.0
    %323 = vmatpush2.msra.mxu0 0.0
    %324 = vmatprep.subr.mxu0 0.0
    %325 = vmatpush2.msra.mxu0 0.0
    %326 = vmatprep.subr.mxu0 0.0
    %327 = vmatpush2.msra.mxu0 0.0
    %328 = vmatprep.subr.mxu0 0.0
    %329 = vmatpush2.msra.mxu0 0.0
    %330 = vmatprep.subr.mxu0 0.0
    %331 = vmatpush2.msra.mxu0 0.0
    %332 = vmatprep.subr.mxu0 0.0
    %333 = vmatpush2.msra.mxu0 0.0
    %334 = vmatprep.subr.mxu0 0.0
    %335 = vmatpush2.msra.mxu0 0.0
    %336 = vmatprep.subr.mxu0 0.0
    %337 = vmatpush2.msra.mxu0 0.0
    %338 = vmatprep.mubr.f32.mxu0 0.0
    %339 = vmatmul.mubr.f32.gmra.mxu0 %v129
    %v340 = vpop.f32.mrf.mxu0
    %v341 = vadd.f32 0.0, %v340
    %v342 = vpop.f32.mrf.mxu0
    %343 = vdwg.mxu0
    %v345 = vsel %vm95, %v341, 0
    %347 = vmatprep.subr.mxu0 0.0
    %348 = vmatpush1.msra.mxu0 0.0
    %349 = vmatprep.subr.mxu0 0.0
    %350 = vmatpush1.msra.mxu0 0.0
    %351 = vmatprep.subr.mxu0 0.0
    %352 = vmatpush1.msra.mxu0 0.0
    %353 = vmatprep.subr.mxu0 0.0
    %354 = vmatpush1.msra.mxu0 0.0
    %355 = vmatprep.subr.mxu0 0.0
    %356 = vmatpush1.msra.mxu0 0.0
    %357 = vmatprep.subr.mxu0 0.0
    %358 = vmatpush1.msra.mxu0 0.0
    %359 = vmatprep.subr.mxu0 0.0
    %360 = vmatpush1.msra.mxu0 0.0
    %361 = vmatprep.subr.mxu0 0.0
    %362 = vmatpush1.msra.mxu0 0.0
    %363 = vmatprep.subr.mxu0 0.0
    %364 = vmatpush1.msra.mxu0 0.0
    %365 = vmatprep.subr.mxu0 0.0
    %366 = vmatpush1.msra.mxu0 0.0
    %367 = vmatprep.subr.mxu0 0.0
    %368 = vmatpush1.msra.mxu0 0.0
    %369 = vmatprep.subr.mxu0 0.0
    %370 = vmatpush1.msra.mxu0 0.0
    %371 = vmatprep.subr.mxu0 0.0
    %372 = vmatpush1.msra.mxu0 0.0
    %373 = vmatprep.subr.mxu0 0.0
    %374 = vmatpush1.msra.mxu0 0.0
    %375 = vmatprep.subr.mxu0 0.0
    %376 = vmatpush1.msra.mxu0 %v127
    %377 = vmatprep.subr.mxu0 0.0
    %378 = vmatpush1.msra.mxu0 %v126
    %379 = vmatprep.subr.mxu0 0.0
    %380 = vmatpush2.msra.mxu0 0.0
    %381 = vmatprep.subr.mxu0 0.0
    %382 = vmatpush2.msra.mxu0 0.0
    %383 = vmatprep.subr.mxu0 0.0
    %384 = vmatpush2.msra.mxu0 0.0
    %385 = vmatprep.subr.mxu0 0.0
    %386 = vmatpush2.msra.mxu0 0.0
    %387 = vmatprep.subr.mxu0 0.0
    %388 = vmatpush2.msra.mxu0 0.0
    %389 = vmatprep.subr.mxu0 0.0
    %390 = vmatpush2.msra.mxu0 0.0
    %391 = vmatprep.subr.mxu0 0.0
    %392 = vmatpush2.msra.mxu0 0.0
    %393 = vmatprep.subr.mxu0 0.0
    %394 = vmatpush2.msra.mxu0 0.0
    %395 = vmatprep.subr.mxu0 0.0
    %396 = vmatpush2.msra.mxu0 0.0
    %397 = vmatprep.subr.mxu0 0.0
    %398 = vmatpush2.msra.mxu0 0.0
    %399 = vmatprep.subr.mxu0 0.0
    %400 = vmatpush2.msra.mxu0 0.0
    %401 = vmatprep.subr.mxu0 0.0
    %402 = vmatpush2.msra.mxu0 0.0
    %403 = vmatprep.subr.mxu0 0.0
    %404 = vmatpush2.msra.mxu0 0.0
    %405 = vmatprep.subr.mxu0 0.0
    %406 = vmatpush2.msra.mxu0 0.0
    %407 = vmatprep.subr.mxu0 0.0
    %408 = vmatpush2.msra.mxu0 0.0
    %409 = vmatprep.subr.mxu0 0.0
    %410 = vmatpush2.msra.mxu0 0.0
    %411 = vmatprep.mubr.f32.mxu0 0.0
    %412 = vmatmul.mubr.f32.gmra.mxu0 %v345
    %v413 = vpop.f32.mrf.mxu0
    %v414 = vadd.f32 0.0, %v413
    %v415 = vpop.f32.mrf.mxu0
    %416 = vdwg.mxu0
    %v417 = vmul.f32 %v271, 2.0
    %v418 = vmul.f32 %v417, %v414
    %v419 = vadd.f32 %v418, 0.0001
    %v420 = vmul.f32 %v271, %v271
    %v421 = vmul.f32 %v414, %v414
    %v422 = vadd.f32 %v420, %v421
    %v423 = vadd.f32 %v422, 0.0001
    %v424 = vrcp.pop %v423
    %v425 = vmul.f32 %v419, %v424
    %v426 = vadd.f32 %v425, 0.0
    %v427 = vadd.f32 %v426, 0.0
    %428 = vmatprep.subr.mxu0 0.0
    %429 = vmatpush1.msra.mxu0 0.0
    %430 = vmatprep.subr.mxu0 0.0
    %431 = vmatpush1.msra.mxu0 0.0
    %432 = vmatprep.subr.mxu0 0.0
    %433 = vmatpush1.msra.mxu0 0.0
    %434 = vmatprep.subr.mxu0 0.0
    %435 = vmatpush1.msra.mxu0 0.0
    %436 = vmatprep.subr.mxu0 0.0
    %437 = vmatpush1.msra.mxu0 0.0
    %438 = vmatprep.subr.mxu0 0.0
    %439 = vmatpush1.msra.mxu0 0.0
    %440 = vmatprep.subr.mxu0 0.0
    %441 = vmatpush1.msra.mxu0 0.0
    %442 = vmatprep.subr.mxu0 0.0
    %443 = vmatpush1.msra.mxu0 0.0
    %444 = vmatprep.subr.mxu0 0.0
    %445 = vmatpush1.msra.mxu0 0.0
    %446 = vmatprep.subr.mxu0 0.0
    %447 = vmatpush1.msra.mxu0 0.0
    %448 = vmatprep.subr.mxu0 0.0
    %449 = vmatpush1.msra.mxu0 0.0
    %450 = vmatprep.subr.mxu0 0.0
    %451 = vmatpush1.msra.mxu0 0.0
    %452 = vmatprep.subr.mxu0 0.0
    %453 = vmatpush1.msra.mxu0 0.0
    %454 = vmatprep.subr.mxu0 0.0
    %455 = vmatpush1.msra.mxu0 0.0
    %456 = vmatprep.subr.mxu0 0.0
    %457 = vmatpush1.msra.mxu0 %v66
    %458 = vmatprep.subr.mxu0 0.0
    %459 = vmatpush1.msra.mxu0 %v65
    %460 = vmatprep.subr.mxu0 0.0
    %461 = vmatpush2.msra.mxu0 0.0
    %462 = vmatprep.subr.mxu0 0.0
    %463 = vmatpush2.msra.mxu0 0.0
    %464 = vmatprep.subr.mxu0 0.0
    %465 = vmatpush2.msra.mxu0 0.0
    %466 = vmatprep.subr.mxu0 0.0
    %467 = vmatpush2.msra.mxu0 0.0
    %468 = vmatprep.subr.mxu0 0.0
    %469 = vmatpush2.msra.mxu0 0.0
    %470 = vmatprep.subr.mxu0 0.0
    %471 = vmatpush2.msra.mxu0 0.0
    %472 = vmatprep.subr.mxu0 0.0
    %473 = vmatpush2.msra.mxu0 0.0
    %474 = vmatprep.subr.mxu0 0.0
    %475 = vmatpush2.msra.mxu0 0.0
    %476 = vmatprep.subr.mxu0 0.0
    %477 = vmatpush2.msra.mxu0 0.0
    %478 = vmatprep.subr.mxu0 0.0
    %479 = vmatpush2.msra.mxu0 0.0
    %480 = vmatprep.subr.mxu0 0.0
    %481 = vmatpush2.msra.mxu0 0.0
    %482 = vmatprep.subr.mxu0 0.0
    %483 = vmatpush2.msra.mxu0 0.0
    %484 = vmatprep.subr.mxu0 0.0
    %485 = vmatpush2.msra.mxu0 0.0
    %486 = vmatprep.subr.mxu0 0.0
    %487 = vmatpush2.msra.mxu0 0.0
    %488 = vmatprep.subr.mxu0 0.0
    %489 = vmatpush2.msra.mxu0 0.0
    %490 = vmatprep.subr.mxu0 0.0
    %491 = vmatpush2.msra.mxu0 0.0
    %492 = vmatprep.mubr.f32.mxu0 0.0
    %493 = vmatmul.mubr.f32.gmra.mxu0 %v129
    %v494 = vpop.f32.mrf.mxu0
    %v495 = vadd.f32 0.0, %v494
    %v496 = vpop.f32.mrf.mxu0
    %497 = vdwg.mxu0
    %v499 = vsel %vm95, %v495, 0
    %501 = vmatprep.subr.mxu0 0.0
    %502 = vmatpush1.msra.mxu0 0.0
    %503 = vmatprep.subr.mxu0 0.0
    %504 = vmatpush1.msra.mxu0 0.0
    %505 = vmatprep.subr.mxu0 0.0
    %506 = vmatpush1.msra.mxu0 0.0
    %507 = vmatprep.subr.mxu0 0.0
    %508 = vmatpush1.msra.mxu0 0.0
    %509 = vmatprep.subr.mxu0 0.0
    %510 = vmatpush1.msra.mxu0 0.0
    %511 = vmatprep.subr.mxu0 0.0
    %512 = vmatpush1.msra.mxu0 0.0
    %513 = vmatprep.subr.mxu0 0.0
    %514 = vmatpush1.msra.mxu0 0.0
    %515 = vmatprep.subr.mxu0 0.0
    %516 = vmatpush1.msra.mxu0 0.0
    %517 = vmatprep.subr.mxu0 0.0
    %518 = vmatpush1.msra.mxu0 0.0
    %519 = vmatprep.subr.mxu0 0.0
    %520 = vmatpush1.msra.mxu0 0.0
    %521 = vmatprep.subr.mxu0 0.0
    %522 = vmatpush1.msra.mxu0 0.0
    %523 = vmatprep.subr.mxu0 0.0
    %524 = vmatpush1.msra.mxu0 0.0
    %525 = vmatprep.subr.mxu0 0.0
    %526 = vmatpush1.msra.mxu0 0.0
    %527 = vmatprep.subr.mxu0 0.0
    %528 = vmatpush1.msra.mxu0 0.0
    %529 = vmatprep.subr.mxu0 0.0
    %530 = vmatpush1.msra.mxu0 %v127
    %531 = vmatprep.subr.mxu0 0.0
    %532 = vmatpush1.msra.mxu0 %v126
    %533 = vmatprep.subr.mxu0 0.0
    %534 = vmatpush2.msra.mxu0 0.0
    %535 = vmatprep.subr.mxu0 0.0
    %536 = vmatpush2.msra.mxu0 0.0
    %537 = vmatprep.subr.mxu0 0.0
    %538 = vmatpush2.msra.mxu0 0.0
    %539 = vmatprep.subr.mxu0 0.0
    %540 = vmatpush2.msra.mxu0 0.0
    %541 = vmatprep.subr.mxu0 0.0
    %542 = vmatpush2.msra.mxu0 0.0
    %543 = vmatprep.subr.mxu0 0.0
    %544 = vmatpush2.msra.mxu0 0.0
    %545 = vmatprep.subr.mxu0 0.0
    %546 = vmatpush2.msra.mxu0 0.0
    %547 = vmatprep.subr.mxu0 0.0
    %548 = vmatpush2.msra.mxu0 0.0
    %549 = vmatprep.subr.mxu0 0.0
    %550 = vmatpush2.msra.mxu0 0.0
    %551 = vmatprep.subr.mxu0 0.0
    %552 = vmatpush2.msra.mxu0 0.0
    %553 = vmatprep.subr.mxu0 0.0
    %554 = vmatpush2.msra.mxu0 0.0
    %555 = vmatprep.subr.mxu0 0.0
    %556 = vmatpush2.msra.mxu0 0.0
    %557 = vmatprep.subr.mxu0 0.0
    %558 = vmatpush2.msra.mxu0 0.0
    %559 = vmatprep.subr.mxu0 0.0
    %560 = vmatpush2.msra.mxu0 0.0
    %561 = vmatprep.subr.mxu0 0.0
    %562 = vmatpush2.msra.mxu0 0.0
    %563 = vmatprep.subr.mxu0 0.0
    %564 = vmatpush2.msra.mxu0 0.0
    %565 = vmatprep.mubr.f32.mxu0 0.0
    %566 = vmatmul.mubr.f32.gmra.mxu0 %v499
    %v567 = vpop.f32.mrf.mxu0
    %v568 = vadd.f32 0.0, %v567
    %v569 = vpop.f32.mrf.mxu0
    %570 = vdwg.mxu0
    %571 = vmatprep.subr.mxu0 0.0
    %572 = vmatpush1.msra.mxu0 0.0
    %573 = vmatprep.subr.mxu0 0.0
    %574 = vmatpush1.msra.mxu0 0.0
    %575 = vmatprep.subr.mxu0 0.0
    %576 = vmatpush1.msra.mxu0 0.0
    %577 = vmatprep.subr.mxu0 0.0
    %578 = vmatpush1.msra.mxu0 0.0
    %579 = vmatprep.subr.mxu0 0.0
    %580 = vmatpush1.msra.mxu0 0.0
    %581 = vmatprep.subr.mxu0 0.0
    %582 = vmatpush1.msra.mxu0 0.0
    %583 = vmatprep.subr.mxu0 0.0
    %584 = vmatpush1.msra.mxu0 0.0
    %585 = vmatprep.subr.mxu0 0.0
    %586 = vmatpush1.msra.mxu0 0.0
    %587 = vmatprep.subr.mxu0 0.0
    %588 = vmatpush1.msra.mxu0 0.0
    %589 = vmatprep.subr.mxu0 0.0
    %590 = vmatpush1.msra.mxu0 0.0
    %591 = vmatprep.subr.mxu0 0.0
    %592 = vmatpush1.msra.mxu0 0.0
    %593 = vmatprep.subr.mxu0 0.0
    %594 = vmatpush1.msra.mxu0 0.0
    %595 = vmatprep.subr.mxu0 0.0
    %596 = vmatpush1.msra.mxu0 0.0
    %597 = vmatprep.subr.mxu0 0.0
    %598 = vmatpush1.msra.mxu0 0.0
    %599 = vmatprep.subr.mxu0 0.0
    %600 = vmatpush1.msra.mxu0 %v70
    %601 = vmatprep.subr.mxu0 0.0
    %602 = vmatpush1.msra.mxu0 %v69
    %603 = vmatprep.subr.mxu0 0.0
    %604 = vmatpush2.msra.mxu0 0.0
    %605 = vmatprep.subr.mxu0 0.0
    %606 = vmatpush2.msra.mxu0 0.0
    %607 = vmatprep.subr.mxu0 0.0
    %608 = vmatpush2.msra.mxu0 0.0
    %609 = vmatprep.subr.mxu0 0.0
    %610 = vmatpush2.msra.mxu0 0.0
    %611 = vmatprep.subr.mxu0 0.0
    %612 = vmatpush2.msra.mxu0 0.0
    %613 = vmatprep.subr.mxu0 0.0
    %614 = vmatpush2.msra.mxu0 0.0
    %615 = vmatprep.subr.mxu0 0.0
    %616 = vmatpush2.msra.mxu0 0.0
    %617 = vmatprep.subr.mxu0 0.0
    %618 = vmatpush2.msra.mxu0 0.0
    %619 = vmatprep.subr.mxu0 0.0
    %620 = vmatpush2.msra.mxu0 0.0
    %621 = vmatprep.subr.mxu0 0.0
    %622 = vmatpush2.msra.mxu0 0.0
    %623 = vmatprep.subr.mxu0 0.0
    %624 = vmatpush2.msra.mxu0 0.0
    %625 = vmatprep.subr.mxu0 0.0
    %626 = vmatpush2.msra.mxu0 0.0
    %627 = vmatprep.subr.mxu0 0.0
    %628 = vmatpush2.msra.mxu0 0.0
    %629 = vmatprep.subr.mxu0 0.0
    %630 = vmatpush2.msra.mxu0 0.0
    %631 = vmatprep.subr.mxu0 0.0
    %632 = vmatpush2.msra.mxu0 0.0
    %633 = vmatprep.subr.mxu0 0.0
    %634 = vmatpush2.msra.mxu0 0.0
    %635 = vmatprep.mubr.f32.mxu0 0.0
    %636 = vmatmul.mubr.f32.gmra.mxu0 %v129
    %v637 = vpop.f32.mrf.mxu0
    %v638 = vadd.f32 0.0, %v637
    %v639 = vpop.f32.mrf.mxu0
    %640 = vdwg.mxu0
    %v642 = vsel %vm95, %v638, 0
    %644 = vmatprep.subr.mxu0 0.0
    %645 = vmatpush1.msra.mxu0 0.0
    %646 = vmatprep.subr.mxu0 0.0
    %647 = vmatpush1.msra.mxu0 0.0
    %648 = vmatprep.subr.mxu0 0.0
    %649 = vmatpush1.msra.mxu0 0.0
    %650 = vmatprep.subr.mxu0 0.0
    %651 = vmatpush1.msra.mxu0 0.0
    %652 = vmatprep.subr.mxu0 0.0
    %653 = vmatpush1.msra.mxu0 0.0
    %654 = vmatprep.subr.mxu0 0.0
    %655 = vmatpush1.msra.mxu0 0.0
    %656 = vmatprep.subr.mxu0 0.0
    %657 = vmatpush1.msra.mxu0 0.0
    %658 = vmatprep.subr.mxu0 0.0
    %659 = vmatpush1.msra.mxu0 0.0
    %660 = vmatprep.subr.mxu0 0.0
    %661 = vmatpush1.msra.mxu0 0.0
    %662 = vmatprep.subr.mxu0 0.0
    %663 = vmatpush1.msra.mxu0 0.0
    %664 = vmatprep.subr.mxu0 0.0
    %665 = vmatpush1.msra.mxu0 0.0
    %666 = vmatprep.subr.mxu0 0.0
    %667 = vmatpush1.msra.mxu0 0.0
    %668 = vmatprep.subr.mxu0 0.0
    %669 = vmatpush1.msra.mxu0 0.0
    %670 = vmatprep.subr.mxu0 0.0
    %671 = vmatpush1.msra.mxu0 0.0
    %672 = vmatprep.subr.mxu0 0.0
    %673 = vmatpush1.msra.mxu0 %v127
    %674 = vmatprep.subr.mxu0 0.0
    %675 = vmatpush1.msra.mxu0 %v126
    %676 = vmatprep.subr.mxu0 0.0
    %677 = vmatpush2.msra.mxu0 0.0
    %678 = vmatprep.subr.mxu0 0.0
    %679 = vmatpush2.msra.mxu0 0.0
    %680 = vmatprep.subr.mxu0 0.0
    %681 = vmatpush2.msra.mxu0 0.0
    %682 = vmatprep.subr.mxu0 0.0
    %683 = vmatpush2.msra.mxu0 0.0
    %684 = vmatprep.subr.mxu0 0.0
    %685 = vmatpush2.msra.mxu0 0.0
    %686 = vmatprep.subr.mxu0 0.0
    %687 = vmatpush2.msra.mxu0 0.0
    %688 = vmatprep.subr.mxu0 0.0
    %689 = vmatpush2.msra.mxu0 0.0
    %690 = vmatprep.subr.mxu0 0.0
    %691 = vmatpush2.msra.mxu0 0.0
    %692 = vmatprep.subr.mxu0 0.0
    %693 = vmatpush2.msra.mxu0 0.0
    %694 = vmatprep.subr.mxu0 0.0
    %695 = vmatpush2.msra.mxu0 0.0
    %696 = vmatprep.subr.mxu0 0.0
    %697 = vmatpush2.msra.mxu0 0.0
    %698 = vmatprep.subr.mxu0 0.0
    %699 = vmatpush2.msra.mxu0 0.0
    %700 = vmatprep.subr.mxu0 0.0
    %701 = vmatpush2.msra.mxu0 0.0
    %702 = vmatprep.subr.mxu0 0.0
    %703 = vmatpush2.msra.mxu0 0.0
    %704 = vmatprep.subr.mxu0 0.0
    %705 = vmatpush2.msra.mxu0 0.0
    %706 = vmatprep.subr.mxu0 0.0
    %707 = vmatpush2.msra.mxu0 0.0
    %708 = vmatprep.mubr.f32.mxu0 0.0
    %709 = vmatmul.mubr.f32.gmra.mxu0 %v642
    %v710 = vpop.f32.mrf.mxu0
    %v711 = vadd.f32 0.0, %v710
    %v712 = vpop.f32.mrf.mxu0
    %713 = vdwg.mxu0
    %v714 = vmul.f32 %v568, 2.0
    %v715 = vmul.f32 %v714, %v711
    %v716 = vadd.f32 %v715, 0.0001
    %v717 = vmul.f32 %v568, %v568
    %v718 = vmul.f32 %v711, %v711
    %v719 = vadd.f32 %v717, %v718
    %v720 = vadd.f32 %v719, 0.0001
    %v721 = vrcp.pop %v720
    %v722 = vmul.f32 %v716, %v721
    %v723 = vadd.f32 %v722, 0.0
    %v724 = vadd.f32 %v723, 0.0
    %725 = vst.msk [vmem:[%s6] sm:$0x1] %vm122, %v427
    %726 = vst.msk [vmem:[%s6 + $0x1] sm:$0x1] %vm122, %v724
    // Predicated region
    $region34: #{tpu_custom_call.1} parent=1 // pred_check
      _
    $region35: #{tpu_custom_call.1} parent=1 // pred_check_branch
      %728 = sbr.rel (0) target = $region37
    $region36: #{tpu_custom_call.1} parent=1 // pred_region
      _
    $region37: #{tpu_custom_call.1} parent=1 // pred_fallthru
      _
    // Predicated region
    $region38: #{tpu_custom_call.1} parent=1 // pred_check
      _
    $region39: #{tpu_custom_call.1} parent=1 // pred_check_branch
      %730 = sbr.rel (0) target = $region41
    $region40: #{tpu_custom_call.1} parent=1 // pred_region
      _
    $region41: #{tpu_custom_call.1} parent=1 // pred_fallthru
      _
    // Predicated region
    $region42: #{tpu_custom_call.1} parent=1 // pred_check
      _
    $region43: #{tpu_custom_call.1} parent=1 // pred_check_branch
      %732 = sbr.rel (0) target = $region45
    $region44: #{tpu_custom_call.1} parent=1 // pred_region
      _
    $region45: #{tpu_custom_call.1} parent=1 // pred_fallthru
      _
    // Predicated region
    $region46: #{tpu_custom_call.1} parent=1 // pred_check
      _
    $region47: #{tpu_custom_call.1} parent=1 // pred_check_branch
      %734 = sbr.rel (0) target = $region49
    $region48: #{tpu_custom_call.1} parent=1 // pred_region
      _
    $region49: #{tpu_custom_call.1} parent=1 // pred_fallthru
      _
    %735 = vsyncpa [#allocation3], 1
    %736 = vsyncpa [#allocation5], 1

</llo_original>
